<compile_context>
chip_gen: v6e
topology: v6e:2x2x1
jax: 0.10.0
libtpu: 0.0.40
codegen_flags: <defaults>
</compile_context>

<pallas_src>
import functools
import math

import jax
import jax.numpy as jnp
from jax.experimental import pallas as pl
from jax.experimental.pallas import tpu as pltpu


# ----------------------------- Pallas kernel ------------------------------- #

def _rmsnorm_kernel(x_ref, g_ref, o_ref, *, eps):
    # x_ref: (tile_rows, D), g_ref: (1, D), o_ref: (tile_rows, D)
    # Reduction pass in f32 (safe on v5e, which has no bf16 VPU/EUP paths).
    x32 = x_ref[...].astype(jnp.float32)
    ms = jnp.mean(x32 * x32, axis=-1, keepdims=True)       # (tile_rows, 1)
    rms = jnp.sqrt(ms)

    # eps added AFTER the sqrt, exactly as in the PyTorch module.
    inv = 1.0 / (rms + eps)                                 # one exact divide per row

    # Scale/gain pass: re-read x_ref so the f32 upcast above does not need to
    # stay live across both passes (reload from VMEM is cheap, kernel stays
    # mem-bound either way; reduces VMEM/vreg temp pressure for bf16 inputs).
    g = g_ref[...].astype(jnp.float32)
    o_ref[...] = (x_ref[...].astype(jnp.float32) * inv * g).astype(o_ref.dtype)


# ------------------------------ tile selection ------------------------------ #

def _round_up(n: int, m: int) -> int:
    return ((n + m - 1) // m) * m


def _vmem_budget_bytes():
    """Per-generation (block-footprint budget, explicit vmem_limit_bytes or None)."""
    kind = ""
    try:
        kind = jax.devices()[0].device_kind.lower()
    except Exception:  # no device info -> conservative defaults
        pass
    if "v5" in kind:                     # v5e / v5 lite: 16 MiB scoped default
        return 12 * 1024 * 1024, None
    if "v6" in kind:                     # v6e: 128 MiB physical; raise the scoped cap
        return 40 * 1024 * 1024, 96 * 1024 * 1024
    if "7" in kind:                      # v7x: 64 MiB physical per TC
        return 32 * 1024 * 1024, 48 * 1024 * 1024
    return 12 * 1024 * 1024, None        # unknown chip: stay conservative


def _pick_row_tile(rows: int, D: int, itemsize: int, budget_bytes: int) -> int:
    """Byte-budget tile picker, dtype/sublane aware."""
    # Sublane quantum: 8 rows for 4-byte, 16 for 2-byte, 32 for 1-byte dtypes.
    quantum = {4: 8, 2: 16, 1: 32}.get(itemsize, 8)

    # Pipeline footprint per row: double-buffered x block + out block (4x block
    # bytes in the input dtype) plus ~2 live f32 row-copies of in-kernel temps.
    per_row_bytes = 4 * D * itemsize + 2 * D * 4

    tile = max(quantum, (budget_bytes // max(per_row_bytes, 1)) // quantum * quantum)
    tile = min(tile, 4096)

    # Keep >= ~4 grid steps when rows allow: gives the pipeline work to overlap
    # and lets v7x shard the "parallel" row axis across both TensorCores.
    if rows >= 4 * quantum:
        tile = min(tile, max(quantum, _round_up(pl.cdiv(rows, 4), quantum)))

    if tile >= rows:
        return rows          # full-extent block is always a legal block dim
    return tile              # quantum multiple -> legal with cdiv-grid padding


# ------------------------------ Python wrapper ------------------------------ #

def rmsnorm(x, g, eps: float = 1e-5):
    """x: (..., D), g: (D,). Returns same shape/dtype as x."""
    orig_shape = x.shape
    D = orig_shape[-1]
    rows = math.prod(orig_shape[:-1]) if len(orig_shape) > 1 else 1

    x2d = x.reshape(rows, D)          # contiguous reshape, no HBM copy
    g2d = g.reshape(1, D)

    budget_bytes, vmem_limit = _vmem_budget_bytes()
    tile = _pick_row_tile(rows, D, x.dtype.itemsize, budget_bytes)
    grid = (pl.cdiv(rows, tile),)     # partial last row-block is padded; padded
                                      # rows are dropped on writeback (D untiled).

    cost = pl.CostEstimate(
        flops=4 * rows * D,                     # square, sum, scale, gain
        transcendentals=rows,                   # sqrt per row
        bytes_accessed=2 * rows * D * x.dtype.itemsize + D * g.dtype.itemsize,
    )

    cp_kwargs = dict(dimension_semantics=("parallel",))   # megacore-shardable on v7x
    if vmem_limit is not None:
        cp_kwargs["vmem_limit_bytes"] = vmem_limit

    out2d = pl.pallas_call(
        functools.partial(_rmsnorm_kernel, eps=eps),
        out_shape=jax.ShapeDtypeStruct((rows, D), x.dtype),
        grid=grid,
        in_specs=[
            pl.BlockSpec((tile, D), lambda i: (i, 0)),   # row tile of x
            pl.BlockSpec((1, D), lambda i: (0, 0)),      # g: resident, never re-DMA'd
        ],
        out_specs=pl.BlockSpec((tile, D), lambda i: (i, 0)),
        compiler_params=pltpu.CompilerParams(**cp_kwargs),
        cost_estimate=cost,
    )(x2d, g2d)

    return out2d.reshape(orig_shape)


# Pure-JAX reference (mirrors the PyTorch forward exactly).
def rmsnorm_reference(x, g, eps: float = 1e-5):
    rms = jnp.sqrt(jnp.mean(x * x, axis=-1, keepdims=True))
    return x / (rms + eps) * g


# ---------------------------------- main ----------------------------------- #

if __name__ == "__main__":
    B, T, D = 2, 8, 32          # batch, seq, hidden (dim of the norm)

    key = jax.random.PRNGKey(0)
    kx, kg = jax.random.split(key)
    x = jax.random.normal(kx, (B, T, D), dtype=jnp.float32)
    # g initialized to ones in the module; perturb slightly so the gain path is exercised.
    g = jnp.ones((D,), dtype=jnp.float32) + 0.1 * jax.random.normal(kg, (D,), dtype=jnp.float32)

    out = rmsnorm(x, g)
    out = jax.block_until_ready(out)

    ref = rmsnorm_reference(x, g)
    assert out.shape == x.shape
    assert out.dtype == x.dtype
    assert jnp.allclose(out, ref, atol=1e-5, rtol=1e-5), "mismatch vs reference"

    print("KERNEL_OK")
</pallas_src>

<mosaic_0001>
module attributes {stable_mosaic.version = 11 : i64} {
  func.func @_rmsnorm_kernel(%arg0: i32, %arg1: memref<16x32xf32, #tpu.memory_space<vmem>>, %arg2: memref<1x32xf32, #tpu.memory_space<vmem>>, %arg3: memref<16x32xf32, #tpu.memory_space<vmem>>) attributes {dimension_semantics = [#tpu.dimension_semantics<parallel>], iteration_bounds = array<i64: 1>, scalar_prefetch = 0 : i64, scratch_operands = 0 : i64, tpu.core_type = #tpu.core_type<tc>, window_params = [{transform_indices = @transform_0, window_bounds = array<i64: 16, 32>}, {pipeline_mode = #tpu.pipeline_mode<synchronous>, transform_indices = @transform_1, window_bounds = array<i64: 1, 32>}, {transform_indices = @transform_2, window_bounds = array<i64: 16, 32>}]} {
    %c0 = arith.constant 0 : index
    %c0_0 = arith.constant 0 : index
    %0 = vector.load %arg1[%c0, %c0_0] : memref<16x32xf32, #tpu.memory_space<vmem>>, vector<16x32xf32>
    %1 = arith.mulf %0, %0 : vector<16x32xf32>
    %cst = arith.constant dense<0.000000e+00> : vector<16xf32>
    %2 = vector.multi_reduction <add>, %1, %cst [1] : vector<16x32xf32> to vector<16xf32>
    %3 = vector.shape_cast %2 : vector<16xf32> to vector<16x1xf32>
    %cst_1 = arith.constant 3.200000e+01 : f32
    %4 = vector.broadcast %cst_1 : f32 to vector<16x1xf32>
    %5 = arith.divf %3, %4 : vector<16x1xf32>
    %6 = math.sqrt %5 : vector<16x1xf32>
    %cst_2 = arith.constant 9.99999974E-6 : f32
    %7 = vector.broadcast %cst_2 : f32 to vector<16x1xf32>
    %8 = arith.addf %6, %7 : vector<16x1xf32>
    %cst_3 = arith.constant 1.000000e+00 : f32
    %9 = vector.broadcast %cst_3 : f32 to vector<16x1xf32>
    %10 = arith.divf %9, %8 : vector<16x1xf32>
    %c0_4 = arith.constant 0 : index
    %c0_5 = arith.constant 0 : index
    %11 = vector.load %arg2[%c0_4, %c0_5] : memref<1x32xf32, #tpu.memory_space<vmem>>, vector<1x32xf32>
    %c0_6 = arith.constant 0 : index
    %c0_7 = arith.constant 0 : index
    %12 = vector.load %arg1[%c0_6, %c0_7] : memref<16x32xf32, #tpu.memory_space<vmem>>, vector<16x32xf32>
    %13 = vector.broadcast %10 : vector<16x1xf32> to vector<16x32xf32>
    %14 = arith.mulf %12, %13 : vector<16x32xf32>
    %15 = vector.broadcast %11 : vector<1x32xf32> to vector<16x32xf32>
    %16 = arith.mulf %14, %15 : vector<16x32xf32>
    %c0_8 = arith.constant 0 : index
    %c0_9 = arith.constant 0 : index
    %17 = vector.load %arg3[%c0_8, %c0_9] : memref<16x32xf32, #tpu.memory_space<vmem>>, vector<16x32xf32>
    tpu.vector_store %arg3[%c0_8, %c0_9], %16 {strides = array<i32>} : memref<16x32xf32, #tpu.memory_space<vmem>>, vector<16x32xf32>,
    return
  }
  func.func @transform_0(%arg0: i32) -> (i32, i32) {
    %c0_i32 = arith.constant 0 : i32
    %c0_i32_0 = arith.constant 0 : i32
    return %arg0, %c0_i32 : i32, i32
  }
  func.func @transform_1(%arg0: i32) -> (i32, i32) {
    %c0_i32 = arith.constant 0 : i32
    %c0_i32_0 = arith.constant 0 : i32
    %c0_i32_1 = arith.constant 0 : i32
    return %c0_i32, %c0_i32_0 : i32, i32
  }
  func.func @transform_2(%arg0: i32) -> (i32, i32) {
    %c0_i32 = arith.constant 0 : i32
    %c0_i32_0 = arith.constant 0 : i32
    return %arg0, %c0_i32 : i32, i32
  }
}

</mosaic_0001>

<llo_original>
// kernel: tpu_custom_call.1
$region0: #{tpu_custom_call.1}
  #allocation0 [shape = 'u32[]', space=smem, size = 0x4, offset = 0x4, fixed_abs, tag = 'smem constant byte address 0x4 - core index']
  #allocation1 [shape = 'u32[144,128]{1,0:T(1,128)}', space=vmem, size = 0x12000, scoped, tag = 'internal scratch']
  %s0 = inlined_call_operand.hbm [shape: f32[16,32], index: 0, kind: input, shape index: {}]
  %s1 = inlined_call_operand.vmem [shape: f32[1,32], index: 1, kind: input, shape index: {}]
  %s2 = inlined_call_operand.hbm [shape: f32[16,32], index: 2, kind: output, shape index: {}]
  %s3 = sld [smem:[#allocation0]]
  $region22: #{tpu_custom_call.1} parent=0
    _
  %s5 = ssub.s32 1, %s3
  %s6 = scalar_select 0, %s5, %s3
  $region1: #{tpu_custom_call.1} parent=0
    #allocation2 [shape = 'u8[8192]{0}', space=vmem, size = 0x2000, scoped, tag = 'input window, operand 0, single buffered']
    #allocation3 [shape = 's32[1]{0}', space=sflag, size = 0x4, scoped, tag = 'scoped memory for tpu_custom_call.1']
    #allocation4 [shape = 's32[1]{0}', space=sflag, size = 0x4, scoped, tag = 'scoped memory for tpu_custom_call.1']
    #allocation5 [shape = 'u8[8192]{0}', space=vmem, size = 0x2000, scoped, tag = 'output window, operand 0, single buffered']
    %7 = vsyncpa [#allocation3], 0
    %8 = vsyncpa [#allocation4], 0
    // Predicated region
    $region2: #{tpu_custom_call.1} parent=1 // pred_check
      _
    $region3: #{tpu_custom_call.1} parent=1 // pred_check_branch
      %10 = sbr.rel (0) target = $region5
    $region4: #{tpu_custom_call.1} parent=1 // pred_region
      %s12 = ssub.s32 256, 256
      %13 = vsyncadd [#allocation3], %s12
      %s14 = sshll.u32 [#allocation2], 4
      %s15 = int_to_ptr.vmem [resolvable:$true] %s14
      %20 = dma.hbm_to_vmem [thread:$0]  %s0, 256, %s15, [#allocation3], 128, 128, 8
    $region5: #{tpu_custom_call.1} parent=1 // pred_fallthru
      _
    // Predicated region
    $region6: #{tpu_custom_call.1} parent=1 // pred_check
      _
    $region7: #{tpu_custom_call.1} parent=1 // pred_check_branch
      %22 = sbr.rel (0) target = $region9
    $region8: #{tpu_custom_call.1} parent=1 // pred_region
      _
    $region9: #{tpu_custom_call.1} parent=1 // pred_fallthru
      _
    // Predicated region
    $region10: #{tpu_custom_call.1} parent=1 // pred_check
      _
    $region11: #{tpu_custom_call.1} parent=1 // pred_check_branch
      %24 = sbr.rel (0) target = $region13
    $region12: #{tpu_custom_call.1} parent=1 // pred_region
      %25 = dma.done [#allocation3], 256
    $region13: #{tpu_custom_call.1} parent=1 // pred_fallthru
      _
    %v26 = vld [vmem:[#allocation2] sm:$0xff]
    %v27 = vld [vmem:[#allocation2 + $0x8] sm:$0xff]
    %v28 = vmul.f32 %v26, %v26
    %v29 = vmul.f32 %v27, %v27
    %vm30 = vcmask 261120
    %v31 = vsel %vm30, %v28, 0.0
    %32 = vadd.xlane.f32.xlu0 %v31
    %v33 = vpop.xlane.xlu0 %32
    %v34 = vsel %vm30, %v29, 0.0
    %35 = vadd.xlane.f32.xlu0 %v34
    %v36 = vpop.xlane.xlu0 %35
    %v37 = vrcp.pop 32.0
    %v38 = vmul.f32 %v33, %v37
    %v39 = vmul.f32 %v36, %v37
    %v40 = vrsqrt.pop %v38
    %v41 = vmul.f32 %v38, %v40
    %vm42 = vcmp.eq.f32.partialorder %v38, inf
    %v43 = vsel %vm42, %v38, %v41
    %vm44 = vcmp.eq.f32.partialorder %v38, 0.0
    %v45 = vand.u32 %v38, 2147483648
    %v46 = vsel %vm44, %v45, %v43
    %v47 = vrsqrt.pop %v39
    %v48 = vmul.f32 %v39, %v47
    %vm49 = vcmp.eq.f32.partialorder %v39, inf
    %v50 = vsel %vm49, %v39, %v48
    %vm51 = vcmp.eq.f32.partialorder %v39, 0.0
    %v52 = vand.u32 %v39, 2147483648
    %v53 = vsel %vm51, %v52, %v50
    %v54 = vadd.f32 %v46, 1e-05
    %v55 = vadd.f32 %v53, 1e-05
    %v56 = vrcp.pop %v54
    %v57 = vmul.f32 1.0, %v56
    %v58 = vrcp.pop %v55
    %v59 = vmul.f32 1.0, %v58
    %v60 = vld [vmem:[%s1] sm:$0x1]
    %v61 = vmul.f32 %v26, %v57
    %v62 = vmul.f32 %v27, %v59
    %v64 = vlaneseq
    %v65 = vshrl.u32 %v64, 7
    %v66 = vsub.s32 0, %v65
    %v67 = vrot.slane %v60, %v66
    %v69 = vmul.f32 %v61, %v67
    %v70 = vmul.f32 %v62, %v67
    %71 = vst.msk [vmem:[#allocation5] sm:$0xff] %vm30, %v69
    %72 = vst.msk [vmem:[#allocation5 + $0x8] sm:$0xff] %vm30, %v70
    // Predicated region
    $region14: #{tpu_custom_call.1} parent=1 // pred_check
      _
    $region15: #{tpu_custom_call.1} parent=1 // pred_check_branch
      %74 = sbr.rel (0) target = $region17
    $region16: #{tpu_custom_call.1} parent=1 // pred_region
      %s76 = ssub.s32 256, 256
      %77 = vsyncadd [#allocation4], %s76
      %s78 = sshll.u32 [#allocation5], 4
      %s79 = int_to_ptr.vmem [resolvable:$true] %s78
      %84 = dma.vmem_to_hbm [thread:$0]  %s79, 256, %s2, [#allocation4], 128, 128, 8
    $region17: #{tpu_custom_call.1} parent=1 // pred_fallthru
      _
    // Predicated region
    $region18: #{tpu_custom_call.1} parent=1 // pred_check
      _
    $region19: #{tpu_custom_call.1} parent=1 // pred_check_branch
      %86 = sbr.rel (0) target = $region21
    $region20: #{tpu_custom_call.1} parent=1 // pred_region
      %87 = dma.done [#allocation4], 256
    $region21: #{tpu_custom_call.1} parent=1 // pred_fallthru
      _
    %88 = vsyncpa [#allocation3], 1
    %89 = vsyncpa [#allocation4], 1

</llo_original>
